<compile_context>
chip_gen: v5e
topology: v5e:2x2
jax: 0.10.0
libtpu: 0.0.40
codegen_flags: <defaults>
</compile_context>

<pallas_src>
import jax
import jax.numpy as jnp
from jax import lax
from jax.experimental import pallas as pl
from jax.experimental.pallas import tpu as pltpu


_VMEM_LIMIT = 48 * 1024 * 1024        # scoped-VMEM budget (<= v7x 64 MiB physical)
_W_RESIDENT_BYTES = 8 * 1024 * 1024   # max weight slab kept VMEM-resident


def _round_up(a, b):
    return ((a + b - 1) // b) * b


# ---------------------------------------------------------------------------
# Pallas kernels
# ---------------------------------------------------------------------------
def _make_conv_stats_kernel(resident, n_k):
    """Pass 1: one (tm x Cp) tile of the conv-as-matmul, K-tiled into an f32
    VMEM accumulator (bf16 operands, f32 MXU accumulation).  On the last K
    step the tile is stored in the compute dtype together with its per-tile
    channel sum / sum-of-squares (partial BatchNorm batch statistics)."""

    def kernel(xc_ref, wt_ref, y_ref, sum_ref, sq_ref, acc_ref):
        k = pl.program_id(2)

        @pl.when(k == 0)
        def _():
            acc_ref[...] = jnp.zeros_like(acc_ref)

        # Resident weight: the full (n_k, tk, Cp) slab lives in VMEM with a
        # constant block index (fetched from HBM once); select the current K
        # tile with a dynamic leading-dim index.
        if resident and n_k > 1:
            w = wt_ref[k]
        else:
            w = wt_ref[0]
        acc_ref[...] += jnp.dot(xc_ref[0], w, preferred_element_type=jnp.float32)

        @pl.when(k == pl.num_programs(2) - 1)
        def _():
            y = acc_ref[...]                                    # (tm, Cp) f32
            y_ref[0] = y.astype(y_ref.dtype)                    # bf16 intermediate
            sum_ref[...] = jnp.sum(y, axis=0, keepdims=True)[None, None]
            sq_ref[...] = jnp.sum(y * y, axis=0, keepdims=True)[None, None]

    return kernel


def _bn_apply_transpose_kernel(y_ref, scale_ref, shift_ref, o_ref):
    """Pass 2: folded-BatchNorm affine (in f32) + in-kernel transpose.  Cast to
    the output dtype *before* the transpose so the XLU/store path moves the
    narrower type.  Output is channel-major so the wrapper only needs a
    slice + reshape to NCHW (no XLA transpose of the result)."""
    yn = y_ref[0].astype(jnp.float32) * scale_ref[...] + shift_ref[...]
    o_ref[0] = yn.astype(o_ref.dtype).T                         # (Cp, tm)


# ---------------------------------------------------------------------------
# Glue (im2col, padding, parameter folding)
# ---------------------------------------------------------------------------
def _im2col(x, kh, kw, stride, padding, dilation):
    """(N,C,H,W) -> (N, Ho*Wo, C*kh*kw) patch matrix.  K ordering is C-major
    then (kh, kw), matching weight.reshape(C_out, C_in*kh*kw).
    TODO(synk): fuse into pass 1 (shifted-window reads from padded NHWC) for
    kh*kw > 1 to avoid the kh*kw x HBM blow-up of this materialization."""
    N, C, H, W = x.shape
    xp = jnp.pad(x, ((0, 0), (0, 0), (padding, padding), (padding, padding)))
    Ho = (H + 2 * padding - dilation * (kh - 1) - 1) // stride + 1
    Wo = (W + 2 * padding - dilation * (kw - 1) - 1) // stride + 1
    cols = []
    for i in range(kh):
        for j in range(kw):
            r0, c0 = i * dilation, j * dilation
            patch = xp[:, :,
                       r0:r0 + stride * (Ho - 1) + 1:stride,
                       c0:c0 + stride * (Wo - 1) + 1:stride]    # (N, C, Ho, Wo)
            cols.append(patch)
    cols = jnp.stack(cols, axis=2)                # (N, C, kh*kw, Ho, Wo)
    cols = cols.transpose(0, 3, 4, 1, 2)          # (N, Ho, Wo, C, kh*kw)
    return cols.reshape(N, Ho * Wo, C * kh * kw), Ho, Wo


def conv2d_bn(x, weight, gamma, beta, *, stride=1, padding=0, dilation=1,
              groups=1, eps=1e-5, compute_dtype=jnp.bfloat16):
    """Forward of Conv2d_BN (training-mode batch statistics).

    x: (N, C_in, H, W); weight: (C_out, C_in, kH, kW); gamma/beta: (C_out,).
    `compute_dtype` is both the matmul-operand dtype and the dtype of the
    pass-1 intermediate (accumulation is always f32)."""
    if groups != 1:
        # TODO(synk): grouped convolution not implemented.
        raise NotImplementedError("Conv2d_BN Pallas kernel: groups > 1 unsupported")
    N, C_in, H, W = x.shape
    C_out, wc_in, kh, kw = weight.shape
    if wc_in != C_in:
        raise ValueError("weight / input channel mismatch")
    out_dtype = x.dtype
    cd = jnp.dtype(compute_dtype)

    x_cols, Ho, Wo = _im2col(x.astype(compute_dtype), kh, kw, stride,
                             padding, dilation)
    HoWo = Ho * Wo
    K = C_in * kh * kw
    M = N * HoWo                          # true element count for BN statistics

    # --- tiling ---------------------------------------------------------------
    Cp = _round_up(C_out, 128)                        # lane-dense channel dim
    tm_cap = 1024 if Cp <= 1024 else 512              # keep acc / out tiles sane
    tm = min(tm_cap, _round_up(HoWo, 128))            # row tile (multiple of 128)
    HoWo_p = _round_up(HoWo, tm)
    n_sp = HoWo_p // tm
    if N * n_sp < 2 and HoWo > 128:                   # v7x: expose >=2 parallel blocks
        tm = _round_up((HoWo + 1) // 2, 128)
        HoWo_p = _round_up(HoWo, tm)
        n_sp = HoWo_p // tm
    if K <= 1024:                                     # single K block, no padding
        tk, Kp = K, K
    else:                                             # K-tiled accumulation
        tk = 512
        Kp = _round_up(K, tk)
    n_k = Kp // tk

    # Weight residency: keep the whole (n_k, tk, Cp) slab in VMEM across the
    # grid when it fits the budget, else stream per-k blocks from HBM.
    w_slab_bytes = Kp * Cp * cd.itemsize
    resident = (n_k == 1) or (w_slab_bytes <= _W_RESIDENT_BYTES)

    # --- operand packing (zero padding is a no-op for matmul and statistics) --
    x_cols = jnp.pad(x_cols, ((0, 0), (0, HoWo_p - HoWo), (0, Kp - K)))
    w_t = weight.reshape(C_out, K).T.astype(compute_dtype)       # (K, C_out)
    w_t = jnp.pad(w_t, ((0, Kp - K), (0, Cp - C_out)))           # (Kp, Cp)
    w_t = w_t.reshape(n_k, tk, Cp)

    if resident:
        w_spec = pl.BlockSpec((n_k, tk, Cp), lambda n, i, k: (0, 0, 0))
    else:
        w_spec = pl.BlockSpec((1, tk, Cp), lambda n, i, k: (k, 0, 0))

    cost1 = pl.CostEstimate(
        flops=int(2 * N * HoWo_p * Kp * Cp),
        transcendentals=0,
        bytes_accessed=int(N * HoWo_p * Kp * cd.itemsize
                           + (1 if resident else N * n_sp) * Kp * Cp * cd.itemsize
                           + N * HoWo_p * Cp * cd.itemsize
                           + 2 * N * n_sp * Cp * 4))

    # --- pass 1: conv matmul + per-tile partial BN statistics -----------------
    y, psum, psq = pl.pallas_call(
        _make_conv_stats_kernel(resident, n_k),
        out_shape=(jax.ShapeDtypeStruct((N, HoWo_p, Cp), compute_dtype),
                   jax.ShapeDtypeStruct((N, n_sp, 1, Cp), jnp.float32),
                   jax.ShapeDtypeStruct((N, n_sp, 1, Cp), jnp.float32)),
        grid=(N, n_sp, n_k),
        in_specs=[pl.BlockSpec((1, tm, tk), lambda n, i, k: (n, i, k)),
                  w_spec],
        out_specs=(pl.BlockSpec((1, tm, Cp), lambda n, i, k: (n, i, 0)),
                   pl.BlockSpec((1, 1, 1, Cp), lambda n, i, k: (n, i, 0, 0)),
                   pl.BlockSpec((1, 1, 1, Cp), lambda n, i, k: (n, i, 0, 0))),
        scratch_shapes=[pltpu.VMEM((tm, Cp), jnp.float32)],
        compiler_params=pltpu.CompilerParams(
            dimension_semantics=("parallel", "parallel", "arbitrary"),
            vmem_limit_bytes=_VMEM_LIMIT),
        cost_estimate=cost1,
    )(x_cols, w_t)

    # --- fold BN (training-mode, biased variance) into per-channel affine -----
    # NOTE: single-pass E[y^2] - E[y]^2 in f32; can lose precision if
    # |mean| >> std for some channel.
    s = psum.sum(axis=(0, 1, 2))                     # (Cp,)  tiny reduction
    sq = psq.sum(axis=(0, 1, 2))                     # (Cp,)
    mean = s / M
    var = jnp.maximum(sq / M - mean * mean, 0.0)     # clamp E[y^2]-E[y]^2 >= 0
    gamma_p = jnp.pad(gamma.astype(jnp.float32), (0, Cp - C_out))
    beta_p = jnp.pad(beta.astype(jnp.float32), (0, Cp - C_out))
    scale_v = gamma_p * lax.rsqrt(var + eps)
    shift_v = beta_p - mean * scale_v
    scale = scale_v.reshape(1, Cp)
    shift = shift_v.reshape(1, Cp)

    cost2 = pl.CostEstimate(
        flops=int(2 * N * HoWo_p * Cp),
        transcendentals=0,
        bytes_accessed=int(N * HoWo_p * Cp * cd.itemsize
                           + N * HoWo_p * Cp * jnp.dtype(out_dtype).itemsize
                           + 2 * Cp * 4))

    # --- pass 2: affine + in-kernel transpose to channel-major ----------------
    out_cm = pl.pallas_call(
        _bn_apply_transpose_kernel,
        out_shape=jax.ShapeDtypeStruct((N, Cp, HoWo_p), out_dtype),
        grid=(N, n_sp),
        in_specs=[pl.BlockSpec((1, tm, Cp), lambda n, i: (n, i, 0)),
                  pl.BlockSpec((1, Cp), lambda n, i: (0, 0)),
                  pl.BlockSpec((1, Cp), lambda n, i: (0, 0))],
        out_specs=pl.BlockSpec((1, Cp, tm), lambda n, i: (n, 0, i)),
        compiler_params=pltpu.CompilerParams(
            dimension_semantics=("parallel", "parallel"),
            vmem_limit_bytes=_VMEM_LIMIT),
        cost_estimate=cost2,
    )(y, scale, shift)

    # Strip channel / spatial padding; pure reshape to NCHW (no XLA transpose).
    return out_cm[:, :C_out, :HoWo].reshape(N, C_out, Ho, Wo)


# ---------------------------------------------------------------------------
# Pure-JAX reference (same bf16-quantized operands, f32 math)
# ---------------------------------------------------------------------------
def _reference(x, weight, gamma, beta, *, stride=1, padding=0, dilation=1,
               eps=1e-5, compute_dtype=jnp.bfloat16):
    xq = x.astype(compute_dtype).astype(jnp.float32)
    wq = weight.astype(compute_dtype).astype(jnp.float32)
    y = lax.conv_general_dilated(
        xq, wq, window_strides=(stride, stride),
        padding=[(padding, padding), (padding, padding)],
        rhs_dilation=(dilation, dilation),
        dimension_numbers=("NCHW", "OIHW", "NCHW"))
    mean = y.mean(axis=(0, 2, 3), keepdims=True)
    var = y.var(axis=(0, 2, 3), keepdims=True)   # biased, like BN training norm
    yn = (y - mean) / jnp.sqrt(var + eps)
    return yn * gamma.reshape(1, -1, 1, 1) + beta.reshape(1, -1, 1, 1)


# ---------------------------------------------------------------------------
if __name__ == "__main__":
    def run_case(key, N, C_in, H, W, C_out, k, stride, padding, dilation):
        kx, kw_ = jax.random.split(key)
        x = jax.random.normal(kx, (N, C_in, H, W), dtype=jnp.float32)
        # kaiming_normal_(mode='fan_out', nonlinearity='relu'):
        #   std = sqrt(2 / fan_out), fan_out = C_out * kH * kW
        fan_out = C_out * k * k
        std = (2.0 / fan_out) ** 0.5
        weight = std * jax.random.normal(kw_, (C_out, C_in, k, k),
                                         dtype=jnp.float32)
        gamma = jnp.ones((C_out,), jnp.float32)   # bn_weight_init = 1
        beta = jnp.zeros((C_out,), jnp.float32)   # bn bias = 0

        out = conv2d_bn(x, weight, gamma, beta, stride=stride, padding=padding,
                        dilation=dilation)
        out = jax.block_until_ready(out)
        ref = _reference(x, weight, gamma, beta, stride=stride, padding=padding,
                         dilation=dilation)

        Ho = (H + 2 * padding - dilation * (k - 1) - 1) // stride + 1
        Wo = (W + 2 * padding - dilation * (k - 1) - 1) // stride + 1
        assert out.shape == (N, C_out, Ho, Wo), out.shape
        # Tolerance accounts for the bf16 pass-1 intermediate (review item).
        err = float(jnp.max(jnp.abs(out - ref)))
        assert jnp.allclose(out, ref, rtol=2e-2, atol=2e-2), err

    keys = jax.random.split(jax.random.PRNGKey(0), 3)
    # Primary config (Conv2d_BN defaults): kernel_size=1, stride=1, padding=0.
    run_case(keys[0], N=2, C_in=4, H=16, W=16, C_out=8,
             k=1, stride=1, padding=1 - 1, dilation=1)
    # 3x3 stride-2: kh*kw>1 im2col path, C_out not a multiple of 128,
    # out-spatial not a multiple of 128.
    run_case(keys[1], N=1, C_in=16, H=16, W=16, C_out=160,
             k=3, stride=2, padding=1, dilation=1)
    # K > 1024: K-tiled accumulation + resident-weight dynamic K-tile select.
    run_case(keys[2], N=2, C_in=128, H=8, W=8, C_out=32,
             k=3, stride=1, padding=1, dilation=1)

    print("KERNEL_OK")
</pallas_src>

<mosaic_0001>
module attributes {stable_mosaic.version = 11 : i64} {
  func.func @kernel(%arg0: i32, %arg1: i32, %arg2: i32, %arg3: memref<1x256x4xbf16, #tpu.memory_space<vmem>>, %arg4: memref<1x4x128xbf16, #tpu.memory_space<vmem>>, %arg5: memref<1x256x128xbf16, #tpu.memory_space<vmem>>, %arg6: memref<1x1x1x128xf32, #tpu.memory_space<vmem>>, %arg7: memref<1x1x1x128xf32, #tpu.memory_space<vmem>>, %arg8: memref<256x128xf32, #tpu.memory_space<vmem>>) attributes {dimension_semantics = [#tpu.dimension_semantics<parallel>, #tpu.dimension_semantics<parallel>, #tpu.dimension_semantics<arbitrary>], iteration_bounds = array<i64: 2, 1, 1>, scalar_prefetch = 0 : i64, scratch_operands = 1 : i64, tpu.core_type = #tpu.core_type<tc>, window_params = [{transform_indices = @transform_0, window_bounds = array<i64: 1, 256, 4>}, {pipeline_mode = #tpu.pipeline_mode<synchronous>, transform_indices = @transform_1, window_bounds = array<i64: 1, 4, 128>}, {transform_indices = @transform_2, window_bounds = array<i64: 1, 256, 128>}, {transform_indices = @transform_3, window_bounds = array<i64: 1, 1, 1, 128>}, {transform_indices = @transform_4, window_bounds = array<i64: 1, 1, 1, 128>}]} {
    %c0_i32 = arith.constant 0 : i32
    %0 = arith.cmpi eq, %arg2, %c0_i32 : i32
    %1 = arith.extui %0 : i1 to i32
    %c0_i32_0 = arith.constant 0 : i32
    %2 = arith.cmpi ne, %1, %c0_i32_0 : i32
    scf.if %2 {
      %cst_12 = arith.constant 0.000000e+00 : f32
      %14 = vector.broadcast %cst_12 : f32 to vector<256x128xf32>
      %c0_13 = arith.constant 0 : index
      %c0_14 = arith.constant 0 : index
      %15 = vector.load %arg8[%c0_13, %c0_14] : memref<256x128xf32, #tpu.memory_space<vmem>>, vector<256x128xf32>
      tpu.vector_store %arg8[%c0_13, %c0_14], %14 {strides = array<i32>} : memref<256x128xf32, #tpu.memory_space<vmem>>, vector<256x128xf32>,
    } else {
    }
    %c0 = arith.constant 0 : index
    %c0_1 = arith.constant 0 : index
    %c0_2 = arith.constant 0 : index
    %3 = vector.load %arg4[%c0, %c0_1, %c0_2] : memref<1x4x128xbf16, #tpu.memory_space<vmem>>, vector<1x4x128xbf16>
    %4 = vector.shape_cast %3 : vector<1x4x128xbf16> to vector<4x128xbf16>
    %c0_3 = arith.constant 0 : index
    %c0_4 = arith.constant 0 : index
    %5 = vector.load %arg8[%c0_3, %c0_4] : memref<256x128xf32, #tpu.memory_space<vmem>>, vector<256x128xf32>
    %c0_5 = arith.constant 0 : index
    %c0_6 = arith.constant 0 : index
    %c0_7 = arith.constant 0 : index
    %6 = vector.load %arg3[%c0_5, %c0_6, %c0_7] : memref<1x256x4xbf16, #tpu.memory_space<vmem>>, vector<1x256x4xbf16>
    %7 = vector.shape_cast %6 : vector<1x256x4xbf16> to vector<256x4xbf16>
    %cst = arith.constant dense<0.000000e+00> : vector<256x128xf32>
    %8 = tpu.matmul %7, %4, %cst {dimension_numbers = #tpu.dot_dimension_numbers<[1], [0], [0], [1], [0, 0, 1, 1], [], []>} : vector<256x4xbf16>, vector<4x128xbf16>, vector<256x128xf32> -> vector<256x128xf32>
    %9 = arith.addf %5, %8 : vector<256x128xf32>
    %c0_8 = arith.constant 0 : index
    %c0_9 = arith.constant 0 : index
    %10 = vector.load %arg8[%c0_8, %c0_9] : memref<256x128xf32, #tpu.memory_space<vmem>>, vector<256x128xf32>
    tpu.vector_store %arg8[%c0_8, %c0_9], %9 {strides = array<i32>} : memref<256x128xf32, #tpu.memory_space<vmem>>, vector<256x128xf32>,
    %c0_i32_10 = arith.constant 0 : i32
    %11 = arith.cmpi eq, %arg2, %c0_i32_10 : i32
    %12 = arith.extui %11 : i1 to i32
    %c0_i32_11 = arith.constant 0 : i32
    %13 = arith.cmpi ne, %12, %c0_i32_11 : i32
    scf.if %13 {
      %c0_12 = arith.constant 0 : index
      %c0_13 = arith.constant 0 : index
      %14 = vector.load %arg8[%c0_12, %c0_13] : memref<256x128xf32, #tpu.memory_space<vmem>>, vector<256x128xf32>
      %15 = arith.truncf %14 : vector<256x128xf32> to vector<256x128xbf16>
      %c0_14 = arith.constant 0 : index
      %c0_15 = arith.constant 0 : index
      %c0_16 = arith.constant 0 : index
      %16 = vector.load %arg5[%c0_14, %c0_15, %c0_16] : memref<1x256x128xbf16, #tpu.memory_space<vmem>>, vector<1x256x128xbf16>
      %17 = vector.shape_cast %16 : vector<1x256x128xbf16> to vector<256x128xbf16>
      %18 = vector.shape_cast %15 : vector<256x128xbf16> to vector<1x256x128xbf16>
      tpu.vector_store %arg5[%c0_14, %c0_15, %c0_16], %18 {strides = array<i32>} : memref<1x256x128xbf16, #tpu.memory_space<vmem>>, vector<1x256x128xbf16>,
      %cst_17 = arith.constant dense<0.000000e+00> : vector<128xf32>
      %19 = vector.multi_reduction <add>, %14, %cst_17 [0] : vector<256x128xf32> to vector<128xf32>
      %20 = vector.shape_cast %19 : vector<128xf32> to vector<1x128xf32>
      %21 = vector.shape_cast %20 : vector<1x128xf32> to vector<1x1x1x128xf32>
      %c0_18 = arith.constant 0 : index
      %c0_19 = arith.constant 0 : index
      %c0_20 = arith.constant 0 : index
      %c0_21 = arith.constant 0 : index
      %22 = vector.load %arg6[%c0_18, %c0_19, %c0_20, %c0_21] : memref<1x1x1x128xf32, #tpu.memory_space<vmem>>, vector<1x1x1x128xf32>
      tpu.vector_store %arg6[%c0_18, %c0_19, %c0_20, %c0_21], %21 {strides = array<i32>} : memref<1x1x1x128xf32, #tpu.memory_space<vmem>>, vector<1x1x1x128xf32>,
      %23 = arith.mulf %14, %14 : vector<256x128xf32>
      %cst_22 = arith.constant dense<0.000000e+00> : vector<128xf32>
      %24 = vector.multi_reduction <add>, %23, %cst_22 [0] : vector<256x128xf32> to vector<128xf32>
      %25 = vector.shape_cast %24 : vector<128xf32> to vector<1x128xf32>
      %26 = vector.shape_cast %25 : vector<1x128xf32> to vector<1x1x1x128xf32>
      %c0_23 = arith.constant 0 : index
      %c0_24 = arith.constant 0 : index
      %c0_25 = arith.constant 0 : index
      %c0_26 = arith.constant 0 : index
      %27 = vector.load %arg7[%c0_23, %c0_24, %c0_25, %c0_26] : memref<1x1x1x128xf32, #tpu.memory_space<vmem>>, vector<1x1x1x128xf32>
      tpu.vector_store %arg7[%c0_23, %c0_24, %c0_25, %c0_26], %26 {strides = array<i32>} : memref<1x1x1x128xf32, #tpu.memory_space<vmem>>, vector<1x1x1x128xf32>,
    } else {
    }
    return
  }
  func.func @transform_0(%arg0: i32, %arg1: i32, %arg2: i32) -> (i32, i32, i32) {
    %c0_i32 = arith.constant 0 : i32
    return %arg0, %arg1, %arg2 : i32, i32, i32
  }
  func.func @transform_1(%arg0: i32, %arg1: i32, %arg2: i32) -> (i32, i32, i32) {
    %c0_i32 = arith.constant 0 : i32
    %c0_i32_0 = arith.constant 0 : i32
    %c0_i32_1 = arith.constant 0 : i32
    %c0_i32_2 = arith.constant 0 : i32
    return %c0_i32, %c0_i32_0, %c0_i32_1 : i32, i32, i32
  }
  func.func @transform_2(%arg0: i32, %arg1: i32, %arg2: i32) -> (i32, i32, i32) {
    %c0_i32 = arith.constant 0 : i32
    %c0_i32_0 = arith.constant 0 : i32
    return %arg0, %arg1, %c0_i32 : i32, i32, i32
  }
  func.func @transform_3(%arg0: i32, %arg1: i32, %arg2: i32) -> (i32, i32, i32, i32) {
    %c0_i32 = arith.constant 0 : i32
    %c0_i32_0 = arith.constant 0 : i32
    %c0_i32_1 = arith.constant 0 : i32
    return %arg0, %arg1, %c0_i32, %c0_i32_0 : i32, i32, i32, i32
  }
  func.func @transform_4(%arg0: i32, %arg1: i32, %arg2: i32) -> (i32, i32, i32, i32) {
    %c0_i32 = arith.constant 0 : i32
    %c0_i32_0 = arith.constant 0 : i32
    %c0_i32_1 = arith.constant 0 : i32
    return %arg0, %arg1, %c0_i32, %c0_i32_0 : i32, i32, i32, i32
  }
}

</mosaic_0001>

<llo_original>
// kernel: tpu_custom_call.1
$region0: #{tpu_custom_call.1}
  #allocation0 [shape = 'u32[]', space=smem, size = 0x4, offset = 0x4, fixed_abs, tag = 'smem constant byte address 0x4 - core index']
  #allocation1 [shape = 'u32[72,128]{1,0:T(1,128)}', space=vmem, size = 0x9000, scoped, tag = 'internal scratch']
  #allocation2 [shape = 'f32[256,128]{1,0:T(8,128)}', space=vmem, size = 0x20000, scoped, tag = 'scratch operand']
  %s0 = inlined_call_operand.vmem [shape: bf16[2,256,4], index: 0, kind: input, shape index: {}]
  %s1 = inlined_call_operand.vmem [shape: bf16[1,4,128], index: 1, kind: input, shape index: {}]
  %s2 = inlined_call_operand.hbm [shape: bf16[2,256,128], index: 2, kind: output, shape index: {0}]
  %s3 = inlined_call_operand.hbm [shape: f32[2,1,1,128], index: 3, kind: output, shape index: {1}]
  %s4 = inlined_call_operand.hbm [shape: f32[2,1,1,128], index: 4, kind: output, shape index: {2}]
  %5 = xla_tuple %s2, %s3, %s4
  %s6 = sld [smem:[#allocation0]]
  $region65: #{tpu_custom_call.1} parent=0
    _
  %s8 = ssub.s32 1, %s6
  %s9 = scalar_select 0, %s8, %s6
  $region1: #{tpu_custom_call.1} parent=0
    #allocation3 [shape = 'u8[131072]{0}', space=vmem, size = 0x20000, scoped, tag = 'output window, operand 0']
    #allocation4 [shape = 's32[2]{0}', space=sflag, size = 0x8, scoped, tag = 'scoped memory for tpu_custom_call.1']
    #allocation5 [shape = 'u8[1024]{0}', space=vmem, size = 0x400, scoped, tag = 'output window, operand 1']
    #allocation6 [shape = 's32[2]{0}', space=sflag, size = 0x8, scoped, tag = 'scoped memory for tpu_custom_call.1']
    #allocation7 [shape = 'u8[1024]{0}', space=vmem, size = 0x400, scoped, tag = 'output window, operand 2']
    %10 = vsyncpa [#allocation4], 0
    %s11 = scalar_lea.sflag [#allocation4], 1
    %12 = vsyncpa %s11, 0
    %13 = vsyncpa [#allocation6], 0
    %s14 = scalar_lea.sflag [#allocation6], 1
    %15 = vsyncpa %s14, 0
    loop: start=0, step=1, limit=4
    $region2: #{tpu_custom_call.1} parent=1 // loop_pre_header
      _
    $region3: #{tpu_custom_call.1} parent=1 // loop_header
      %s17 = sphi 0, %s21
      %p18 = scmp.ge.s32.totalorder %s17, 4
      %s24 = sphi 0, %s43
      %s25 = sphi 0, %s39
      %s26 = sphi 0, %s35
      %s27 = sphi 0, %s24
      %s28 = sphi 0, %s25
      %s29 = sphi 0, %s26
      %s30 = sphi 0, %s27
      %s31 = sphi 0, %s28
      %s32 = sphi 0, %s29
      %s50 = sphi 0, %s52
      %s53 = sphi 0, %s50
      %s54 = sphi 0, %s53
      %s70 = sphi 0, %s54
      %s74 = sphi 0, %s74
      %s76 = sphi 0, %s74
      %s77 = sphi 0, %s76
      %s91 = sphi 0, %s77
      %s99 = sphi 0, %s101
      %s102 = sphi 0, %s99
      %s103 = sphi 0, %s102
      %s119 = sphi 0, %s103
      %s127 = sphi 0, %s129
      %s130 = sphi 0, %s127
      %s131 = sphi 0, %s130
      %s147 = sphi 0, %s131
      %s155 = sphi 0, %s157
      %s158 = sphi 0, %s155
      %s159 = sphi 0, %s158
      %s175 = sphi 0, %s159
    $region4: #{tpu_custom_call.1} parent=1 // loop_header_branch
      %20 = sbr.rel (%p18) target = $region8
    $region5: #{tpu_custom_call.1} parent=1 // loop_body
      %s22 = ssub.s32 %s17, 1
      %s23 = ssub.s32 %s17, 2
      %s33 = sadd.s32 1, %s26
      %p34 = scmp.ge.s32.totalorder %s33, 1
      %s35 = scalar_select %p34, 0, %s33
      %s36 = sadd.s32 1, %s25
      %s37 = scalar_select %p34, %s36, %s25
      %p38 = scmp.ge.s32.totalorder %s37, 1
      %s39 = scalar_select %p38, 0, %s37
      %s40 = sadd.s32 1, %s24
      %s41 = scalar_select %p38, %s40, %s24
      %p42 = scmp.ge.s32.totalorder %s41, 2
      %s43 = scalar_select %p42, 0, %s41
      %s44 = ssub.s32 %s24, %s43
      %s45 = ssub.s32 %s25, %s39
      %s46 = sor.u32 %s44, %s45
      %s47 = ssub.s32 %s26, %s35
      %s48 = sor.u32 %s46, %s47
      %p49 = scmp.eq.s32.totalorder %s48, 0
      %s51 = sadd.s32 %s50, 1
      %s52 = scalar_select %p49, %s50, %s51
      %p55 = pneg %p49
      %p56 = scmp.eq.s32.totalorder %s17, 1
      %p57 = por %p55, %p56
      %p58 = scmp.ne.s32.totalorder %s50, %s53
      %p59 = scmp.eq.s32.totalorder %s17, 0
      %p60 = por %p58, %p59
      %p61 = scmp.ne.s32.totalorder %s50, %s53
      %p62 = scmp.eq.s32.totalorder %s22, 1
      %p63 = por %p61, %p62
      %p64 = scmp.ne.s32.totalorder %s53, %s54
      %p65 = scmp.eq.s32.totalorder %s22, 0
      %p66 = por %p64, %p65
      %p67 = scmp.ne.s32.totalorder %s53, %s54
      %p68 = scmp.eq.s32.totalorder %s23, 1
      %p69 = por %p67, %p68
      %p71 = scmp.ne.s32.totalorder %s54, %s70
      %p72 = scmp.eq.s32.totalorder %s23, 0
      %p73 = por %p71, %p72
      %s75 = sadd.s32 %s74, 1
      %p78 = scmp.eq.s32.totalorder %s17, 1
      %p79 = scmp.ne.s32.totalorder %s74, %s76
      %p80 = scmp.eq.s32.totalorder %s17, 0
      %p81 = por %p79, %p80
      %p82 = scmp.ne.s32.totalorder %s74, %s76
      %p83 = scmp.eq.s32.totalorder %s22, 1
      %p84 = por %p82, %p83
      %p85 = scmp.ne.s32.totalorder %s76, %s77
      %p86 = scmp.eq.s32.totalorder %s22, 0
      %p87 = por %p85, %p86
      %p88 = scmp.ne.s32.totalorder %s76, %s77
      %p89 = scmp.eq.s32.totalorder %s23, 1
      %p90 = por %p88, %p89
      %p92 = scmp.ne.s32.totalorder %s77, %s91
      %p93 = scmp.eq.s32.totalorder %s23, 0
      %p94 = por %p92, %p93
      %s95 = ssub.s32 %s24, %s43
      %s96 = ssub.s32 %s25, %s39
      %s97 = sor.u32 %s95, %s96
      %p98 = scmp.eq.s32.totalorder %s97, 0
      %s100 = sadd.s32 %s99, 1
      %s101 = scalar_select %p98, %s99, %s100
      %p104 = pneg %p98
      %p105 = scmp.eq.s32.totalorder %s17, 1
      %p106 = por %p104, %p105
      %p107 = scmp.ne.s32.totalorder %s99, %s102
      %p108 = scmp.eq.s32.totalorder %s17, 0
      %p109 = por %p107, %p108
      %p110 = scmp.ne.s32.totalorder %s99, %s102
      %p111 = scmp.eq.s32.totalorder %s22, 1
      %p112 = por %p110, %p111
      %p113 = scmp.ne.s32.totalorder %s102, %s103
      %p114 = scmp.eq.s32.totalorder %s22, 0
      %p115 = por %p113, %p114
      %p116 = scmp.ne.s32.totalorder %s102, %s103
      %p117 = scmp.eq.s32.totalorder %s23, 1
      %p118 = por %p116, %p117
      %p120 = scmp.ne.s32.totalorder %s103, %s119
      %p121 = scmp.eq.s32.totalorder %s23, 0
      %p122 = por %p120, %p121
      %s123 = ssub.s32 %s24, %s43
      %s124 = ssub.s32 %s25, %s39
      %s125 = sor.u32 %s123, %s124
      %p126 = scmp.eq.s32.totalorder %s125, 0
      %s128 = sadd.s32 %s127, 1
      %s129 = scalar_select %p126, %s127, %s128
      %p132 = pneg %p126
      %p133 = scmp.eq.s32.totalorder %s17, 1
      %p134 = por %p132, %p133
      %p135 = scmp.ne.s32.totalorder %s127, %s130
      %p136 = scmp.eq.s32.totalorder %s17, 0
      %p137 = por %p135, %p136
      %p138 = scmp.ne.s32.totalorder %s127, %s130
      %p139 = scmp.eq.s32.totalorder %s22, 1
      %p140 = por %p138, %p139
      %p141 = scmp.ne.s32.totalorder %s130, %s131
      %p142 = scmp.eq.s32.totalorder %s22, 0
      %p143 = por %p141, %p142
      %p144 = scmp.ne.s32.totalorder %s130, %s131
      %p145 = scmp.eq.s32.totalorder %s23, 1
      %p146 = por %p144, %p145
      %p148 = scmp.ne.s32.totalorder %s131, %s147
      %p149 = scmp.eq.s32.totalorder %s23, 0
      %p150 = por %p148, %p149
      %s151 = ssub.s32 %s24, %s43
      %s152 = ssub.s32 %s25, %s39
      %s153 = sor.u32 %s151, %s152
      %p154 = scmp.eq.s32.totalorder %s153, 0
      %s156 = sadd.s32 %s155, 1
      %s157 = scalar_select %p154, %s155, %s156
      %p160 = pneg %p154
      %p161 = scmp.eq.s32.totalorder %s17, 1
      %p162 = por %p160, %p161
      %p163 = scmp.ne.s32.totalorder %s155, %s158
      %p164 = scmp.eq.s32.totalorder %s17, 0
      %p165 = por %p163, %p164
      %p166 = scmp.ne.s32.totalorder %s155, %s158
      %p167 = scmp.eq.s32.totalorder %s22, 1
      %p168 = por %p166, %p167
      %p169 = scmp.ne.s32.totalorder %s158, %s159
      %p170 = scmp.eq.s32.totalorder %s22, 0
      %p171 = por %p169, %p170
      %p172 = scmp.ne.s32.totalorder %s158, %s159
      %p173 = scmp.eq.s32.totalorder %s23, 1
      %p174 = por %p172, %p173
      %p176 = scmp.ne.s32.totalorder %s159, %s175
      %p177 = scmp.eq.s32.totalorder %s23, 0
      %p178 = por %p176, %p177
      %p179 = scmp.le.s32.totalorder 1, %s17
      %p180 = scmp.lt.s32.totalorder %s17, 3
      %p181 = pnand %p179, %p180
      %p182 = pneg %p181
      // Predicated region
      $region9: #{tpu_custom_call.1} parent=5 // pred_check
        _
      $region10: #{tpu_custom_call.1} parent=5 // pred_check_branch
        %184 = sbr.rel (%p181) target = $region12
      $region11: #{tpu_custom_call.1} parent=5 // pred_region
        %s185 = ssub.s32 %s17, 1
        // Predicated region
        $region13: #{tpu_custom_call.1} parent=11 // pred_check
          %p186 = pneg %p87
        $region14: #{tpu_custom_call.1} parent=11 // pred_check_branch
          %188 = sbr.rel (%p186) target = $region16
        $region15: #{tpu_custom_call.1} parent=11 // pred_region
          _
        $region16: #{tpu_custom_call.1} parent=11 // pred_fallthru
          _
      $region12: #{tpu_custom_call.1} parent=5 // pred_fallthru
        _
      %p189 = scmp.lt.s32.totalorder %s17, 2
      // Predicated region
      $region17: #{tpu_custom_call.1} parent=5 // pred_check
        %p190 = pneg %p189
      $region18: #{tpu_custom_call.1} parent=5 // pred_check_branch
        %192 = sbr.rel (%p190) target = $region20
      $region19: #{tpu_custom_call.1} parent=5 // pred_region
        // Predicated region
        $region21: #{tpu_custom_call.1} parent=19 // pred_check
          %p193 = pneg %p60
        $region22: #{tpu_custom_call.1} parent=19 // pred_check_branch
          %195 = sbr.rel (%p193) target = $region24
        $region23: #{tpu_custom_call.1} parent=19 // pred_region
          %s196 = smul.u32 32, %s25
          %p197 = scmp.lt.s32.totalorder %s24, 1
          %s198 = scalar_select %p197, %s24, 1
          %p199 = scmp.lt.s32.totalorder %s196, 31
          %s200 = scalar_select %p199, %s196, 31
          %p201 = scmp.lt.s32.totalorder %s26, 0
          %s202 = scalar_select %p201, %s26, 0
          %s203 = sadd.s32 %s202, %s200
          %s204 = smul.addr %s198, 32
          %s205 = sadd.s32 %s203, %s204
          %s206 = smul.addr %s205, 4
          %s207 = scalar_lea.vmem %s0, %s206
          %s208 = smul.u32 32, %s25
        $region24: #{tpu_custom_call.1} parent=19 // pred_fallthru
          _
      $region20: #{tpu_custom_call.1} parent=5 // pred_fallthru
        _
      %p209 = scmp.le.s32.totalorder 1, %s17
      %p210 = scmp.lt.s32.totalorder %s17, 3
      %p211 = pnand %p209, %p210
      %p212 = pneg %p211
      // Predicated region
      $region25: #{tpu_custom_call.1} parent=5 // pred_check
        _
      $region26: #{tpu_custom_call.1} parent=5 // pred_check_branch
        %214 = sbr.rel (%p211) target = $region28
      $region27: #{tpu_custom_call.1} parent=5 // pred_region
        %s215 = ssub.s32 %s17, 1
        %s216 = smul.u32 32, %s28
        %p217 = scmp.lt.s32.totalorder %s27, 1
        %s218 = scalar_select %p217, %s27, 1
        %p219 = scmp.lt.s32.totalorder %s216, 31
        %s220 = scalar_select %p219, %s216, 31
        %p221 = scmp.lt.s32.totalorder %s29, 0
        %s222 = scalar_select %p221, %s29, 0
        %s223 = sadd.s32 %s222, %s220
        %s224 = smul.addr %s218, 32
        %s225 = sadd.s32 %s223, %s224
        %s226 = smul.addr %s225, 4
        %s227 = scalar_lea.vmem %s0, %s226
        %p228 = pneg %p66
        %p229 = pneg %p63
        %p230 = pneg %p87
        %p231 = pneg %p84
        %p232 = pneg %p115
        %p233 = pneg %p112
        %s234 = sand.u32 %s102, 1
        %s235 = scalar_lea.sflag [#allocation4], %s234
        %s236 = sand.u32 %s102, 1
        %s237 = smul.addr %s236, 128
        %s238 = scalar_lea.vmem [#allocation3], %s237
        %p239 = pneg %p143
        %p240 = pneg %p140
        %s241 = sand.u32 %s22, 1
        %s242 = scalar_lea.sflag [#allocation6], %s241
        %s243 = sand.u32 %s130, 1
        %s244 = scalar_lea.vmem [#allocation5], %s243
        %p245 = pneg %p171
        %p246 = pneg %p168
        %s247 = sand.u32 %s22, 1
        %s248 = scalar_lea.sflag [#allocation6], %s247
        %s249 = sand.u32 %s158, 1
        %s250 = scalar_lea.vmem [#allocation7], %s249
        %s251 = smul.u32 32, %s28
        %p252 = scmp.lt.s32.totalorder %s27, 1
        %s253 = scalar_select %p252, %s27, 1
        %p254 = scmp.lt.s32.totalorder %s251, 31
        %s255 = scalar_select %p254, %s251, 31
        %p256 = scmp.lt.s32.totalorder %s29, 0
        %s257 = scalar_select %p256, %s29, 0
        %s258 = sadd.s32 %s257, %s255
        %s259 = smul.addr %s253, 32
        %s260 = sadd.s32 %s258, %s259
        %s261 = smul.addr %s260, 4
        %s262 = scalar_lea.vmem %s0, %s261
        %s263 = smul.u32 32, %s28
        %s264 = smul.u32 32, %s28
        %p266 = scmp.eq.s32.totalorder %s29, 0
        // Predicated region
        $region29: #{tpu_custom_call.1} parent=27 // pred_check
          %p267 = pneg %p266
        $region30: #{tpu_custom_call.1} parent=27 // pred_check_branch
          %269 = sbr.rel (%p267) target = $region32
        $region31: #{tpu_custom_call.1} parent=27 // pred_region
          %270 = vst [vmem:[#allocation2] sm:$0xff] 0.0
          %271 = vst [vmem:[#allocation2 + $0x8] sm:$0xff] 0.0
          %272 = vst [vmem:[#allocation2 + $0x10] sm:$0xff] 0.0
          %273 = vst [vmem:[#allocation2 + $0x18] sm:$0xff] 0.0
          %274 = vst [vmem:[#allocation2 + $0x20] sm:$0xff] 0.0
          %275 = vst [vmem:[#allocation2 + $0x28] sm:$0xff] 0.0
          %276 = vst [vmem:[#allocation2 + $0x30] sm:$0xff] 0.0
          %277 = vst [vmem:[#allocation2 + $0x38] sm:$0xff] 0.0
          %278 = vst [vmem:[#allocation2 + $0x40] sm:$0xff] 0.0
          %279 = vst [vmem:[#allocation2 + $0x48] sm:$0xff] 0.0
          %280 = vst [vmem:[#allocation2 + $0x50] sm:$0xff] 0.0
          %281 = vst [vmem:[#allocation2 + $0x58] sm:$0xff] 0.0
          %282 = vst [vmem:[#allocation2 + $0x60] sm:$0xff] 0.0
          %283 = vst [vmem:[#allocation2 + $0x68] sm:$0xff] 0.0
          %284 = vst [vmem:[#allocation2 + $0x70] sm:$0xff] 0.0
          %285 = vst [vmem:[#allocation2 + $0x78] sm:$0xff] 0.0
          %286 = vst [vmem:[#allocation2 + $0x80] sm:$0xff] 0.0
          %287 = vst [vmem:[#allocation2 + $0x88] sm:$0xff] 0.0
          %288 = vst [vmem:[#allocation2 + $0x90] sm:$0xff] 0.0
          %289 = vst [vmem:[#allocation2 + $0x98] sm:$0xff] 0.0
          %290 = vst [vmem:[#allocation2 + $0xa0] sm:$0xff] 0.0
          %291 = vst [vmem:[#allocation2 + $0xa8] sm:$0xff] 0.0
          %292 = vst [vmem:[#allocation2 + $0xb0] sm:$0xff] 0.0
          %293 = vst [vmem:[#allocation2 + $0xb8] sm:$0xff] 0.0
          %294 = vst [vmem:[#allocation2 + $0xc0] sm:$0xff] 0.0
          %295 = vst [vmem:[#allocation2 + $0xc8] sm:$0xff] 0.0
          %296 = vst [vmem:[#allocation2 + $0xd0] sm:$0xff] 0.0
          %297 = vst [vmem:[#allocation2 + $0xd8] sm:$0xff] 0.0
          %298 = vst [vmem:[#allocation2 + $0xe0] sm:$0xff] 0.0
          %299 = vst [vmem:[#allocation2 + $0xe8] sm:$0xff] 0.0
          %300 = vst [vmem:[#allocation2 + $0xf0] sm:$0xff] 0.0
          %301 = vst [vmem:[#allocation2 + $0xf8] sm:$0xff] 0.0
        $region32: #{tpu_custom_call.1} parent=27 // pred_fallthru
          _
        %v302 = vld [vmem:[%s1] sm:$0x3]
        %v303 = vld [vmem:[#allocation2] sm:$0xff]
        %v304 = vld [vmem:[#allocation2 + $0x8] sm:$0xff]
        %v305 = vld [vmem:[#allocation2 + $0x10] sm:$0xff]
        %v306 = vld [vmem:[#allocation2 + $0x18] sm:$0xff]
        %v307 = vld [vmem:[#allocation2 + $0x20] sm:$0xff]
        %v308 = vld [vmem:[#allocation2 + $0x28] sm:$0xff]
        %v309 = vld [vmem:[#allocation2 + $0x30] sm:$0xff]
        %v310 = vld [vmem:[#allocation2 + $0x38] sm:$0xff]
        %v311 = vld [vmem:[#allocation2 + $0x40] sm:$0xff]
        %v312 = vld [vmem:[#allocation2 + $0x48] sm:$0xff]
        %v313 = vld [vmem:[#allocation2 + $0x50] sm:$0xff]
        %v314 = vld [vmem:[#allocation2 + $0x58] sm:$0xff]
        %v315 = vld [vmem:[#allocation2 + $0x60] sm:$0xff]
        %v316 = vld [vmem:[#allocation2 + $0x68] sm:$0xff]
        %v317 = vld [vmem:[#allocation2 + $0x70] sm:$0xff]
        %v318 = vld [vmem:[#allocation2 + $0x78] sm:$0xff]
        %v319 = vld [vmem:[#allocation2 + $0x80] sm:$0xff]
        %v320 = vld [vmem:[#allocation2 + $0x88] sm:$0xff]
        %v321 = vld [vmem:[#allocation2 + $0x90] sm:$0xff]
        %v322 = vld [vmem:[#allocation2 + $0x98] sm:$0xff]
        %v323 = vld [vmem:[#allocation2 + $0xa0] sm:$0xff]
        %v324 = vld [vmem:[#allocation2 + $0xa8] sm:$0xff]
        %v325 = vld [vmem:[#allocation2 + $0xb0] sm:$0xff]
        %v326 = vld [vmem:[#allocation2 + $0xb8] sm:$0xff]
        %v327 = vld [vmem:[#allocation2 + $0xc0] sm:$0xff]
        %v328 = vld [vmem:[#allocation2 + $0xc8] sm:$0xff]
        %v329 = vld [vmem:[#allocation2 + $0xd0] sm:$0xff]
        %v330 = vld [vmem:[#allocation2 + $0xd8] sm:$0xff]
        %v331 = vld [vmem:[#allocation2 + $0xe0] sm:$0xff]
        %v332 = vld [vmem:[#allocation2 + $0xe8] sm:$0xff]
        %v333 = vld [vmem:[#allocation2 + $0xf0] sm:$0xff]
        %v334 = vld [vmem:[#allocation2 + $0xf8] sm:$0xff]
        %v335 = vld [vmem:[%s262] sm:$0xf]
        %v336 = vld [vmem:[%s262 + $0x4] sm:$0xf]
        %v337 = vld [vmem:[%s262 + $0x8] sm:$0xf]
        %v338 = vld [vmem:[%s262 + $0xc] sm:$0xf]
        %v339 = vld [vmem:[%s262 + $0x10] sm:$0xf]
        %v340 = vld [vmem:[%s262 + $0x14] sm:$0xf]
        %v341 = vld [vmem:[%s262 + $0x18] sm:$0xf]
        %v342 = vld [vmem:[%s262 + $0x1c] sm:$0xf]
        %v343 = vld [vmem:[%s262 + $0x20] sm:$0xf]
        %v344 = vld [vmem:[%s262 + $0x24] sm:$0xf]
        %v345 = vld [vmem:[%s262 + $0x28] sm:$0xf]
        %v346 = vld [vmem:[%s262 + $0x2c] sm:$0xf]
        %v347 = vld [vmem:[%s262 + $0x30] sm:$0xf]
        %v348 = vld [vmem:[%s262 + $0x34] sm:$0xf]
        %v349 = vld [vmem:[%s262 + $0x38] sm:$0xf]
        %v350 = vld [vmem:[%s262 + $0x3c] sm:$0xf]
        %v351 = vld [vmem:[%s262 + $0x40] sm:$0xf]
        %v352 = vld [vmem:[%s262 + $0x44] sm:$0xf]
        %v353 = vld [vmem:[%s262 + $0x48] sm:$0xf]
        %v354 = vld [vmem:[%s262 + $0x4c] sm:$0xf]
        %v355 = vld [vmem:[%s262 + $0x50] sm:$0xf]
        %v356 = vld [vmem:[%s262 + $0x54] sm:$0xf]
        %v357 = vld [vmem:[%s262 + $0x58] sm:$0xf]
        %v358 = vld [vmem:[%s262 + $0x5c] sm:$0xf]
        %v359 = vld [vmem:[%s262 + $0x60] sm:$0xf]
        %v360 = vld [vmem:[%s262 + $0x64] sm:$0xf]
        %v361 = vld [vmem:[%s262 + $0x68] sm:$0xf]
        %v362 = vld [vmem:[%s262 + $0x6c] sm:$0xf]
        %v363 = vld [vmem:[%s262 + $0x70] sm:$0xf]
        %v364 = vld [vmem:[%s262 + $0x74] sm:$0xf]
        %v365 = vld [vmem:[%s262 + $0x78] sm:$0xf]
        %v366 = vld [vmem:[%s262 + $0x7c] sm:$0xf]
        %v399 = vunpack.c.l.b16 %v335
        %v400 = vunpack.c.l.b16 %v336
        %v401 = vunpack.c.l.b16 %v337
        %v402 = vunpack.c.l.b16 %v338
        %v403 = vunpack.c.l.b16 %v339
        %v404 = vunpack.c.l.b16 %v340
        %v405 = vunpack.c.l.b16 %v341
        %v406 = vunpack.c.l.b16 %v342
        %v407 = vunpack.c.l.b16 %v343
        %v408 = vunpack.c.l.b16 %v344
        %v409 = vunpack.c.l.b16 %v345
        %v410 = vunpack.c.l.b16 %v346
        %v411 = vunpack.c.l.b16 %v347
        %v412 = vunpack.c.l.b16 %v348
        %v413 = vunpack.c.l.b16 %v349
        %v414 = vunpack.c.l.b16 %v350
        %v415 = vunpack.c.l.b16 %v351
        %v416 = vunpack.c.l.b16 %v352
        %v417 = vunpack.c.l.b16 %v353
        %v418 = vunpack.c.l.b16 %v354
        %v419 = vunpack.c.l.b16 %v355
        %v420 = vunpack.c.l.b16 %v356
        %v421 = vunpack.c.l.b16 %v357
        %v422 = vunpack.c.l.b16 %v358
        %v423 = vunpack.c.l.b16 %v359
        %v424 = vunpack.c.l.b16 %v360
        %v425 = vunpack.c.l.b16 %v361
        %v426 = vunpack.c.l.b16 %v362
        %v427 = vunpack.c.l.b16 %v363
        %v428 = vunpack.c.l.b16 %v364
        %v429 = vunpack.c.l.b16 %v365
        %v430 = vunpack.c.l.b16 %v366
        %v431 = vpack.c.b16 %v400, %v399
        %v432 = vpack.c.b16 %v402, %v401
        %v433 = vpack.c.b16 %v404, %v403
        %v434 = vpack.c.b16 %v406, %v405
        %v435 = vpack.c.b16 %v408, %v407
        %v436 = vpack.c.b16 %v410, %v409
        %v437 = vpack.c.b16 %v412, %v411
        %v438 = vpack.c.b16 %v414, %v413
        %v439 = vpack.c.b16 %v416, %v415
        %v440 = vpack.c.b16 %v418, %v417
        %v441 = vpack.c.b16 %v420, %v419
        %v442 = vpack.c.b16 %v422, %v421
        %v443 = vpack.c.b16 %v424, %v423
        %v444 = vpack.c.b16 %v426, %v425
        %v445 = vpack.c.b16 %v428, %v427
        %v446 = vpack.c.b16 %v430, %v429
        %vm447 = vcmask 31744
        %v449 = vsel %vm447, %v431, 0
        %v452 = vsel %vm447, %v432, 0
        %v455 = vsel %vm447, %v433, 0
        %v458 = vsel %vm447, %v434, 0
        %v461 = vsel %vm447, %v435, 0
        %v464 = vsel %vm447, %v436, 0
        %v467 = vsel %vm447, %v437, 0
        %v470 = vsel %vm447, %v438, 0
        %v473 = vsel %vm447, %v439, 0
        %v476 = vsel %vm447, %v440, 0
        %v479 = vsel %vm447, %v441, 0
        %v482 = vsel %vm447, %v442, 0
        %v485 = vsel %vm447, %v443, 0
        %v488 = vsel %vm447, %v444, 0
        %v491 = vsel %vm447, %v445, 0
        %v494 = vsel %vm447, %v446, 0
        %vm496 = vcmask 1041408
        %v498 = vsel %vm496, %v302, 0
        %500 = vmatpush.bf16.msra.mxu0 0
        %501 = vmatpush.bf16.msra.mxu0 0
        %502 = vmatpush.bf16.msra.mxu0 0
        %503 = vmatpush.bf16.msra.mxu0 0
        %504 = vmatpush.bf16.msra.mxu0 0
        %505 = vmatpush.bf16.msra.mxu0 0
        %506 = vmatpush.bf16.msra.mxu0 0
        %507 = vmatpush.bf16.msra.mxu0 %v498
        %508 = vmatmul.bf16.gmra.mxu0 %v449
        %v509 = vpop.f32.mrf.mxu0
        %v510 = vadd.f32 0.0, %v509
        %v511 = vpop.f32.mrf.mxu0
        %v512 = vadd.f32 0.0, %v511
        %513 = vmatmul.bf16.gmra.mxu0 %v452
        %v514 = vpop.f32.mrf.mxu0
        %v515 = vadd.f32 0.0, %v514
        %v516 = vpop.f32.mrf.mxu0
        %v517 = vadd.f32 0.0, %v516
        %518 = vmatmul.bf16.gmra.mxu0 %v455
        %v519 = vpop.f32.mrf.mxu0
        %v520 = vadd.f32 0.0, %v519
        %v521 = vpop.f32.mrf.mxu0
        %v522 = vadd.f32 0.0, %v521
        %523 = vmatmul.bf16.gmra.mxu0 %v458
        %v524 = vpop.f32.mrf.mxu0
        %v525 = vadd.f32 0.0, %v524
        %v526 = vpop.f32.mrf.mxu0
        %v527 = vadd.f32 0.0, %v526
        %528 = vmatmul.bf16.gmra.mxu0 %v461
        %v529 = vpop.f32.mrf.mxu0
        %v530 = vadd.f32 0.0, %v529
        %v531 = vpop.f32.mrf.mxu0
        %v532 = vadd.f32 0.0, %v531
        %533 = vmatmul.bf16.gmra.mxu0 %v464
        %v534 = vpop.f32.mrf.mxu0
        %v535 = vadd.f32 0.0, %v534
        %v536 = vpop.f32.mrf.mxu0
        %v537 = vadd.f32 0.0, %v536
        %538 = vmatmul.bf16.gmra.mxu0 %v467
        %v539 = vpop.f32.mrf.mxu0
        %v540 = vadd.f32 0.0, %v539
        %v541 = vpop.f32.mrf.mxu0
        %v542 = vadd.f32 0.0, %v541
        %543 = vmatmul.bf16.gmra.mxu0 %v470
        %v544 = vpop.f32.mrf.mxu0
        %v545 = vadd.f32 0.0, %v544
        %v546 = vpop.f32.mrf.mxu0
        %v547 = vadd.f32 0.0, %v546
        %548 = vmatmul.bf16.gmra.mxu0 %v473
        %v549 = vpop.f32.mrf.mxu0
        %v550 = vadd.f32 0.0, %v549
        %v551 = vpop.f32.mrf.mxu0
        %v552 = vadd.f32 0.0, %v551
        %553 = vmatmul.bf16.gmra.mxu0 %v476
        %v554 = vpop.f32.mrf.mxu0
        %v555 = vadd.f32 0.0, %v554
        %v556 = vpop.f32.mrf.mxu0
        %v557 = vadd.f32 0.0, %v556
        %558 = vmatmul.bf16.gmra.mxu0 %v479
        %v559 = vpop.f32.mrf.mxu0
        %v560 = vadd.f32 0.0, %v559
        %v561 = vpop.f32.mrf.mxu0
        %v562 = vadd.f32 0.0, %v561
        %563 = vmatmul.bf16.gmra.mxu0 %v482
        %v564 = vpop.f32.mrf.mxu0
        %v565 = vadd.f32 0.0, %v564
        %v566 = vpop.f32.mrf.mxu0
        %v567 = vadd.f32 0.0, %v566
        %568 = vmatmul.bf16.gmra.mxu0 %v485
        %v569 = vpop.f32.mrf.mxu0
        %v570 = vadd.f32 0.0, %v569
        %v571 = vpop.f32.mrf.mxu0
        %v572 = vadd.f32 0.0, %v571
        %573 = vmatmul.bf16.gmra.mxu0 %v488
        %v574 = vpop.f32.mrf.mxu0
        %v575 = vadd.f32 0.0, %v574
        %v576 = vpop.f32.mrf.mxu0
        %v577 = vadd.f32 0.0, %v576
        %578 = vmatmul.bf16.gmra.mxu0 %v491
        %v579 = vpop.f32.mrf.mxu0
        %v580 = vadd.f32 0.0, %v579
        %v581 = vpop.f32.mrf.mxu0
        %v582 = vadd.f32 0.0, %v581
        %583 = vmatmul.bf16.gmra.mxu0 %v494
        %v584 = vpop.f32.mrf.mxu0
        %v585 = vadd.f32 0.0, %v584
        %v586 = vpop.f32.mrf.mxu0
        %v587 = vadd.f32 0.0, %v586
        %588 = vdwg.mxu0
        %v589 = vadd.f32 %v303, %v510
        %v590 = vadd.f32 %v304, %v512
        %v591 = vadd.f32 %v305, %v515
        %v592 = vadd.f32 %v306, %v517
        %v593 = vadd.f32 %v307, %v520
        %v594 = vadd.f32 %v308, %v522
        %v595 = vadd.f32 %v309, %v525
        %v596 = vadd.f32 %v310, %v527
        %v597 = vadd.f32 %v311, %v530
        %v598 = vadd.f32 %v312, %v532
        %v599 = vadd.f32 %v313, %v535
        %v600 = vadd.f32 %v314, %v537
        %v601 = vadd.f32 %v315, %v540
        %v602 = vadd.f32 %v316, %v542
        %v603 = vadd.f32 %v317, %v545
        %v604 = vadd.f32 %v318, %v547
        %v605 = vadd.f32 %v319, %v550
        %v606 = vadd.f32 %v320, %v552
        %v607 = vadd.f32 %v321, %v555
        %v608 = vadd.f32 %v322, %v557
        %v609 = vadd.f32 %v323, %v560
        %v610 = vadd.f32 %v324, %v562
        %v611 = vadd.f32 %v325, %v565
        %v612 = vadd.f32 %v326, %v567
        %v613 = vadd.f32 %v327, %v570
        %v614 = vadd.f32 %v328, %v572
        %v615 = vadd.f32 %v329, %v575
        %v616 = vadd.f32 %v330, %v577
        %v617 = vadd.f32 %v331, %v580
        %v618 = vadd.f32 %v332, %v582
        %v619 = vadd.f32 %v333, %v585
        %v620 = vadd.f32 %v334, %v587
        %621 = vst [vmem:[#allocation2] sm:$0xff] %v589
        %622 = vst [vmem:[#allocation2 + $0x8] sm:$0xff] %v590
        %623 = vst [vmem:[#allocation2 + $0x10] sm:$0xff] %v591
        %624 = vst [vmem:[#allocation2 + $0x18] sm:$0xff] %v592
        %625 = vst [vmem:[#allocation2 + $0x20] sm:$0xff] %v593
        %626 = vst [vmem:[#allocation2 + $0x28] sm:$0xff] %v594
        %627 = vst [vmem:[#allocation2 + $0x30] sm:$0xff] %v595
        %628 = vst [vmem:[#allocation2 + $0x38] sm:$0xff] %v596
        %629 = vst [vmem:[#allocation2 + $0x40] sm:$0xff] %v597
        %630 = vst [vmem:[#allocation2 + $0x48] sm:$0xff] %v598
        %631 = vst [vmem:[#allocation2 + $0x50] sm:$0xff] %v599
        %632 = vst [vmem:[#allocation2 + $0x58] sm:$0xff] %v600
        %633 = vst [vmem:[#allocation2 + $0x60] sm:$0xff] %v601
        %634 = vst [vmem:[#allocation2 + $0x68] sm:$0xff] %v602
        %635 = vst [vmem:[#allocation2 + $0x70] sm:$0xff] %v603
        %636 = vst [vmem:[#allocation2 + $0x78] sm:$0xff] %v604
        %637 = vst [vmem:[#allocation2 + $0x80] sm:$0xff] %v605
        %638 = vst [vmem:[#allocation2 + $0x88] sm:$0xff] %v606
        %639 = vst [vmem:[#allocation2 + $0x90] sm:$0xff] %v607
        %640 = vst [vmem:[#allocation2 + $0x98] sm:$0xff] %v608
        %641 = vst [vmem:[#allocation2 + $0xa0] sm:$0xff] %v609
        %642 = vst [vmem:[#allocation2 + $0xa8] sm:$0xff] %v610
        %643 = vst [vmem:[#allocation2 + $0xb0] sm:$0xff] %v611
        %644 = vst [vmem:[#allocation2 + $0xb8] sm:$0xff] %v612
        %645 = vst [vmem:[#allocation2 + $0xc0] sm:$0xff] %v613
        %646 = vst [vmem:[#allocation2 + $0xc8] sm:$0xff] %v614
        %647 = vst [vmem:[#allocation2 + $0xd0] sm:$0xff] %v615
        %648 = vst [vmem:[#allocation2 + $0xd8] sm:$0xff] %v616
        %649 = vst [vmem:[#allocation2 + $0xe0] sm:$0xff] %v617
        %650 = vst [vmem:[#allocation2 + $0xe8] sm:$0xff] %v618
        %651 = vst [vmem:[#allocation2 + $0xf0] sm:$0xff] %v619
        %652 = vst [vmem:[#allocation2 + $0xf8] sm:$0xff] %v620
        // Predicated region
        $region33: #{tpu_custom_call.1} parent=27 // pred_check
          %p653 = pneg %p266
        $region34: #{tpu_custom_call.1} parent=27 // pred_check_branch
          %655 = sbr.rel (%p653) target = $region36
        $region35: #{tpu_custom_call.1} parent=27 // pred_region
          %v656 = vld [vmem:[#allocation2] sm:$0xff]
          %v657 = vld [vmem:[#allocation2 + $0x8] sm:$0xff]
          %v658 = vld [vmem:[#allocation2 + $0x10] sm:$0xff]
          %v659 = vld [vmem:[#allocation2 + $0x18] sm:$0xff]
          %v660 = vld [vmem:[#allocation2 + $0x20] sm:$0xff]
          %v661 = vld [vmem:[#allocation2 + $0x28] sm:$0xff]
          %v662 = vld [vmem:[#allocation2 + $0x30] sm:$0xff]
          %v663 = vld [vmem:[#allocation2 + $0x38] sm:$0xff]
          %v664 = vld [vmem:[#allocation2 + $0x40] sm:$0xff]
          %v665 = vld [vmem:[#allocation2 + $0x48] sm:$0xff]
          %v666 = vld [vmem:[#allocation2 + $0x50] sm:$0xff]
          %v667 = vld [vmem:[#allocation2 + $0x58] sm:$0xff]
          %v668 = vld [vmem:[#allocation2 + $0x60] sm:$0xff]
          %v669 = vld [vmem:[#allocation2 + $0x68] sm:$0xff]
          %v670 = vld [vmem:[#allocation2 + $0x70] sm:$0xff]
          %v671 = vld [vmem:[#allocation2 + $0x78] sm:$0xff]
          %v672 = vld [vmem:[#allocation2 + $0x80] sm:$0xff]
          %v673 = vld [vmem:[#allocation2 + $0x88] sm:$0xff]
          %v674 = vld [vmem:[#allocation2 + $0x90] sm:$0xff]
          %v675 = vld [vmem:[#allocation2 + $0x98] sm:$0xff]
          %v676 = vld [vmem:[#allocation2 + $0xa0] sm:$0xff]
          %v677 = vld [vmem:[#allocation2 + $0xa8] sm:$0xff]
          %v678 = vld [vmem:[#allocation2 + $0xb0] sm:$0xff]
          %v679 = vld [vmem:[#allocation2 + $0xb8] sm:$0xff]
          %v680 = vld [vmem:[#allocation2 + $0xc0] sm:$0xff]
          %v681 = vld [vmem:[#allocation2 + $0xc8] sm:$0xff]
          %v682 = vld [vmem:[#allocation2 + $0xd0] sm:$0xff]
          %v683 = vld [vmem:[#allocation2 + $0xd8] sm:$0xff]
          %v684 = vld [vmem:[#allocation2 + $0xe0] sm:$0xff]
          %v685 = vld [vmem:[#allocation2 + $0xe8] sm:$0xff]
          %v686 = vld [vmem:[#allocation2 + $0xf0] sm:$0xff]
          %v687 = vld [vmem:[#allocation2 + $0xf8] sm:$0xff]
          %v688 = vpack.c.bf16 %v656, %v656
          %v689 = vpack.c.bf16 %v657, %v657
          %v690 = vpack.c.bf16 %v658, %v658
          %v691 = vpack.c.bf16 %v659, %v659
          %v692 = vpack.c.bf16 %v660, %v660
          %v693 = vpack.c.bf16 %v661, %v661
          %v694 = vpack.c.bf16 %v662, %v662
          %v695 = vpack.c.bf16 %v663, %v663
          %v696 = vpack.c.bf16 %v664, %v664
          %v697 = vpack.c.bf16 %v665, %v665
          %v698 = vpack.c.bf16 %v666, %v666
          %v699 = vpack.c.bf16 %v667, %v667
          %v700 = vpack.c.bf16 %v668, %v668
          %v701 = vpack.c.bf16 %v669, %v669
          %v702 = vpack.c.bf16 %v670, %v670
          %v703 = vpack.c.bf16 %v671, %v671
          %v704 = vpack.c.bf16 %v672, %v672
          %v705 = vpack.c.bf16 %v673, %v673
          %v706 = vpack.c.bf16 %v674, %v674
          %v707 = vpack.c.bf16 %v675, %v675
          %v708 = vpack.c.bf16 %v676, %v676
          %v709 = vpack.c.bf16 %v677, %v677
          %v710 = vpack.c.bf16 %v678, %v678
          %v711 = vpack.c.bf16 %v679, %v679
          %v712 = vpack.c.bf16 %v680, %v680
          %v713 = vpack.c.bf16 %v681, %v681
          %v714 = vpack.c.bf16 %v682, %v682
          %v715 = vpack.c.bf16 %v683, %v683
          %v716 = vpack.c.bf16 %v684, %v684
          %v717 = vpack.c.bf16 %v685, %v685
          %v718 = vpack.c.bf16 %v686, %v686
          %v719 = vpack.c.bf16 %v687, %v687
          %720 = vst [vmem:[%s238] sm:$0xf] %v688
          %721 = vst [vmem:[%s238 + $0x4] sm:$0xf] %v689
          %722 = vst [vmem:[%s238 + $0x8] sm:$0xf] %v690
          %723 = vst [vmem:[%s238 + $0xc] sm:$0xf] %v691
          %724 = vst [vmem:[%s238 + $0x10] sm:$0xf] %v692
          %725 = vst [vmem:[%s238 + $0x14] sm:$0xf] %v693
          %726 = vst [vmem:[%s238 + $0x18] sm:$0xf] %v694
          %727 = vst [vmem:[%s238 + $0x1c] sm:$0xf] %v695
          %728 = vst [vmem:[%s238 + $0x20] sm:$0xf] %v696
          %729 = vst [vmem:[%s238 + $0x24] sm:$0xf] %v697
          %730 = vst [vmem:[%s238 + $0x28] sm:$0xf] %v698
          %731 = vst [vmem:[%s238 + $0x2c] sm:$0xf] %v699
          %732 = vst [vmem:[%s238 + $0x30] sm:$0xf] %v700
          %733 = vst [vmem:[%s238 + $0x34] sm:$0xf] %v701
          %734 = vst [vmem:[%s238 + $0x38] sm:$0xf] %v702
          %735 = vst [vmem:[%s238 + $0x3c] sm:$0xf] %v703
          %736 = vst [vmem:[%s238 + $0x40] sm:$0xf] %v704
          %737 = vst [vmem:[%s238 + $0x44] sm:$0xf] %v705
          %738 = vst [vmem:[%s238 + $0x48] sm:$0xf] %v706
          %739 = vst [vmem:[%s238 + $0x4c] sm:$0xf] %v707
          %740 = vst [vmem:[%s238 + $0x50] sm:$0xf] %v708
          %741 = vst [vmem:[%s238 + $0x54] sm:$0xf] %v709
          %742 = vst [vmem:[%s238 + $0x58] sm:$0xf] %v710
          %743 = vst [vmem:[%s238 + $0x5c] sm:$0xf] %v711
          %744 = vst [vmem:[%s238 + $0x60] sm:$0xf] %v712
          %745 = vst [vmem:[%s238 + $0x64] sm:$0xf] %v713
          %746 = vst [vmem:[%s238 + $0x68] sm:$0xf] %v714
          %747 = vst [vmem:[%s238 + $0x6c] sm:$0xf] %v715
          %748 = vst [vmem:[%s238 + $0x70] sm:$0xf] %v716
          %749 = vst [vmem:[%s238 + $0x74] sm:$0xf] %v717
          %750 = vst [vmem:[%s238 + $0x78] sm:$0xf] %v718
          %751 = vst [vmem:[%s238 + $0x7c] sm:$0xf] %v719
          %v752 = vadd.f32 %v656, %v657
          %v753 = vadd.f32 %v752, %v658
          %v754 = vadd.f32 %v753, %v659
          %v755 = vadd.f32 %v754, %v660
          %v756 = vadd.f32 %v755, %v661
          %v757 = vadd.f32 %v756, %v662
          %v758 = vadd.f32 %v757, %v663
          %v759 = vadd.f32 %v758, %v664
          %v760 = vadd.f32 %v759, %v665
          %v761 = vadd.f32 %v760, %v666
          %v762 = vadd.f32 %v761, %v667
          %v763 = vadd.f32 %v762, %v668
          %v764 = vadd.f32 %v763, %v669
          %v765 = vadd.f32 %v764, %v670
          %v766 = vadd.f32 %v765, %v671
          %v767 = vadd.f32 %v766, %v672
          %v768 = vadd.f32 %v767, %v673
          %v769 = vadd.f32 %v768, %v674
          %v770 = vadd.f32 %v769, %v675
          %v771 = vadd.f32 %v770, %v676
          %v772 = vadd.f32 %v771, %v677
          %v773 = vadd.f32 %v772, %v678
          %v774 = vadd.f32 %v773, %v679
          %v775 = vadd.f32 %v774, %v680
          %v776 = vadd.f32 %v775, %v681
          %v777 = vadd.f32 %v776, %v682
          %v778 = vadd.f32 %v777, %v683
          %v779 = vadd.f32 %v778, %v684
          %v780 = vadd.f32 %v779, %v685
          %v781 = vadd.f32 %v780, %v686
          %v782 = vadd.f32 %v781, %v687
          %v783 = vrot.slane %v782, 4
          %v784 = vadd.f32 %v782, %v783
          %v785 = vrot.slane %v784, 2
          %v786 = vadd.f32 %v784, %v785
          %v787 = vrot.slane %v786, 1
          %v788 = vadd.f32 %v786, %v787
          %789 = vst [vmem:[%s244] sm:$0x1] %v788
          %v790 = vmul.f32 %v656, %v656
          %v791 = vmul.f32 %v657, %v657
          %v792 = vmul.f32 %v658, %v658
          %v793 = vmul.f32 %v659, %v659
          %v794 = vmul.f32 %v660, %v660
          %v795 = vmul.f32 %v661, %v661
          %v796 = vmul.f32 %v662, %v662
          %v797 = vmul.f32 %v663, %v663
          %v798 = vmul.f32 %v664, %v664
          %v799 = vmul.f32 %v665, %v665
          %v800 = vmul.f32 %v666, %v666
          %v801 = vmul.f32 %v667, %v667
          %v802 = vmul.f32 %v668, %v668
          %v803 = vmul.f32 %v669, %v669
          %v804 = vmul.f32 %v670, %v670
          %v805 = vmul.f32 %v671, %v671
          %v806 = vmul.f32 %v672, %v672
          %v807 = vmul.f32 %v673, %v673
          %v808 = vmul.f32 %v674, %v674
          %v809 = vmul.f32 %v675, %v675
          %v810 = vmul.f32 %v676, %v676
          %v811 = vmul.f32 %v677, %v677
          %v812 = vmul.f32 %v678, %v678
          %v813 = vmul.f32 %v679, %v679
          %v814 = vmul.f32 %v680, %v680
          %v815 = vmul.f32 %v681, %v681
          %v816 = vmul.f32 %v682, %v682
          %v817 = vmul.f32 %v683, %v683
          %v818 = vmul.f32 %v684, %v684
          %v819 = vmul.f32 %v685, %v685
          %v820 = vmul.f32 %v686, %v686
          %v821 = vmul.f32 %v687, %v687
          %v822 = vadd.f32 %v790, %v791
          %v823 = vadd.f32 %v822, %v792
          %v824 = vadd.f32 %v823, %v793
          %v825 = vadd.f32 %v824, %v794
          %v826 = vadd.f32 %v825, %v795
          %v827 = vadd.f32 %v826, %v796
          %v828 = vadd.f32 %v827, %v797
          %v829 = vadd.f32 %v828, %v798
          %v830 = vadd.f32 %v829, %v799
          %v831 = vadd.f32 %v830, %v800
          %v832 = vadd.f32 %v831, %v801
          %v833 = vadd.f32 %v832, %v802
          %v834 = vadd.f32 %v833, %v803
          %v835 = vadd.f32 %v834, %v804
          %v836 = vadd.f32 %v835, %v805
          %v837 = vadd.f32 %v836, %v806
          %v838 = vadd.f32 %v837, %v807
          %v839 = vadd.f32 %v838, %v808
          %v840 = vadd.f32 %v839, %v809
          %v841 = vadd.f32 %v840, %v810
          %v842 = vadd.f32 %v841, %v811
          %v843 = vadd.f32 %v842, %v812
          %v844 = vadd.f32 %v843, %v813
          %v845 = vadd.f32 %v844, %v814
          %v846 = vadd.f32 %v845, %v815
          %v847 = vadd.f32 %v846, %v816
          %v848 = vadd.f32 %v847, %v817
          %v849 = vadd.f32 %v848, %v818
          %v850 = vadd.f32 %v849, %v819
          %v851 = vadd.f32 %v850, %v820
          %v852 = vadd.f32 %v851, %v821
          %v853 = vrot.slane %v852, 4
          %v854 = vadd.f32 %v852, %v853
          %v855 = vrot.slane %v854, 2
          %v856 = vadd.f32 %v854, %v855
          %v857 = vrot.slane %v856, 1
          %v858 = vadd.f32 %v856, %v857
          %859 = vst [vmem:[%s250] sm:$0x1] %v858
        $region36: #{tpu_custom_call.1} parent=27 // pred_fallthru
          _
        %s860 = sand.u32 %s102, 1
        %s861 = scalar_lea.sflag [#allocation4], %s860
        %s862 = sand.u32 %s102, 1
        %s863 = smul.addr %s862, 128
        %s864 = scalar_lea.vmem [#allocation3], %s863
        %s865 = sand.u32 %s22, 1
        %s866 = scalar_lea.sflag [#allocation6], %s865
        %s867 = sand.u32 %s130, 1
        %s868 = scalar_lea.vmem [#allocation5], %s867
        %s869 = sand.u32 %s22, 1
        %s870 = scalar_lea.sflag [#allocation6], %s869
        %s871 = sand.u32 %s158, 1
        %s872 = scalar_lea.vmem [#allocation7], %s871
        // Predicated region
        $region37: #{tpu_custom_call.1} parent=27 // pred_check
          %p873 = pneg %p112
        $region38: #{tpu_custom_call.1} parent=27 // pred_check_branch
          %875 = sbr.rel (%p873) target = $region40
        $region39: #{tpu_custom_call.1} parent=27 // pred_region
          %s876 = smul.u32 32, %s28
          %878 = vsyncadd %s861, 0
          %s879 = smul.addr %s27, 32
          %s880 = sadd.s32 %s876, %s879
          %s881 = smul.addr %s880, 4
          %s882 = scalar_lea.hbm %s2, %s881
          %s883 = sshll.u32 %s864, 4
          %s884 = int_to_ptr.vmem [resolvable:$true] %s883
          %s885 = sshll.u32 %s882, 4
          %s886 = int_to_ptr.hbm [resolvable:$true] %s885
          %891 = dma.vmem_to_hbm [thread:$0]  %s884, 2048, %s886, %s861, 64, 64, 4
        $region40: #{tpu_custom_call.1} parent=27 // pred_fallthru
          _
        // Predicated region
        $region41: #{tpu_custom_call.1} parent=27 // pred_check
          %p892 = pneg %p140
        $region42: #{tpu_custom_call.1} parent=27 // pred_check_branch
          %894 = sbr.rel (%p892) target = $region44
        $region43: #{tpu_custom_call.1} parent=27 // pred_region
          %896 = vsyncadd %s866, 0
          %s897 = sadd.s32 %s28, %s27
          %s898 = scalar_lea.hbm %s3, %s897
          %s900 = sshll.u32 %s868, 4
          %s901 = int_to_ptr.vmem [resolvable:$true] %s900
          %s902 = sshll.u32 %s898, 4
          %s903 = int_to_ptr.hbm [resolvable:$true] %s902
          %905 = dma.vmem_to_hbm [thread:$0]  %s901, 16, %s903, %s866
        $region44: #{tpu_custom_call.1} parent=27 // pred_fallthru
          _
        // Predicated region
        $region45: #{tpu_custom_call.1} parent=27 // pred_check
          %p906 = pneg %p168
        $region46: #{tpu_custom_call.1} parent=27 // pred_check_branch
          %908 = sbr.rel (%p906) target = $region48
        $region47: #{tpu_custom_call.1} parent=27 // pred_region
          %910 = vsyncadd %s870, 0
          %s911 = sadd.s32 %s28, %s27
          %s912 = scalar_lea.hbm %s4, %s911
          %s914 = sshll.u32 %s872, 4
          %s915 = int_to_ptr.vmem [resolvable:$true] %s914
          %s916 = sshll.u32 %s912, 4
          %s917 = int_to_ptr.hbm [resolvable:$true] %s916
          %919 = dma.vmem_to_hbm [thread:$0]  %s915, 16, %s917, %s870
        $region48: #{tpu_custom_call.1} parent=27 // pred_fallthru
          _
      $region28: #{tpu_custom_call.1} parent=5 // pred_fallthru
        _
      %p920 = scmp.le.s32.totalorder 2, %s17
      // Predicated region
      $region49: #{tpu_custom_call.1} parent=5 // pred_check
        %p921 = pneg %p920
      $region50: #{tpu_custom_call.1} parent=5 // pred_check_branch
        %923 = sbr.rel (%p921) target = $region52
      $region51: #{tpu_custom_call.1} parent=5 // pred_region
        %s924 = ssub.s32 %s17, 2
        // Predicated region
        $region53: #{tpu_custom_call.1} parent=51 // pred_check
          %p925 = pneg %p118
        $region54: #{tpu_custom_call.1} parent=51 // pred_check_branch
          %927 = sbr.rel (%p925) target = $region56
        $region55: #{tpu_custom_call.1} parent=51 // pred_region
          %s928 = sand.u32 %s103, 1
          %s929 = scalar_lea.sflag [#allocation4], %s928
          %s930 = sand.u32 %s103, 1
          %s931 = smul.addr %s930, 128
          %s932 = scalar_lea.vmem [#allocation3], %s931
          %934 = dma.done %s929, 2048
        $region56: #{tpu_custom_call.1} parent=51 // pred_fallthru
          _
        // Predicated region
        $region57: #{tpu_custom_call.1} parent=51 // pred_check
          %p935 = pneg %p146
        $region58: #{tpu_custom_call.1} parent=51 // pred_check_branch
          %937 = sbr.rel (%p935) target = $region60
        $region59: #{tpu_custom_call.1} parent=51 // pred_region
          %s938 = sand.u32 %s23, 1
          %s939 = scalar_lea.sflag [#allocation6], %s938
          %s940 = sand.u32 %s131, 1
          %s941 = scalar_lea.vmem [#allocation5], %s940
          %943 = dma.done %s939, 16
        $region60: #{tpu_custom_call.1} parent=51 // pred_fallthru
          _
        // Predicated region
        $region61: #{tpu_custom_call.1} parent=51 // pred_check
          %p944 = pneg %p174
        $region62: #{tpu_custom_call.1} parent=51 // pred_check_branch
          %946 = sbr.rel (%p944) target = $region64
        $region63: #{tpu_custom_call.1} parent=51 // pred_region
          %s947 = sand.u32 %s23, 1
          %s948 = scalar_lea.sflag [#allocation6], %s947
          %s949 = sand.u32 %s159, 1
          %s950 = scalar_lea.vmem [#allocation7], %s949
          %952 = dma.done %s948, 16
        $region64: #{tpu_custom_call.1} parent=51 // pred_fallthru
          _
      $region52: #{tpu_custom_call.1} parent=5 // pred_fallthru
        _
    $region6: #{tpu_custom_call.1} parent=1 // loop_footer
      %s21 = sadd.s32 1, %s17
    $region7: #{tpu_custom_call.1} parent=1 // loop_footer_branch
      %16 = sbr.rel target = $region3
    $region8: #{tpu_custom_call.1} parent=1 // loop_exit
      _
    %953 = vsyncpa [#allocation4], 1
    %s954 = scalar_lea.sflag [#allocation4], 1
    %955 = vsyncpa %s954, 1
    %956 = vsyncpa [#allocation6], 1
    %s957 = scalar_lea.sflag [#allocation6], 1
    %958 = vsyncpa %s957, 1

</llo_original>
